<compile_context>
chip_gen: v6e
topology: v6e:2x2x1
jax: 0.10.0
libtpu: 0.0.40
codegen_flags: <defaults>
</compile_context>

<pallas_src>
import functools
import math

import jax
import jax.numpy as jnp
import numpy as np
from jax.experimental import pallas as pl
from jax.experimental.pallas import tpu as pltpu


def _round_up(x, mult):
    return ((x + mult - 1) // mult) * mult


def _arcface_kernel(cls_ref, label_ref, out_ref, exsum_ref, tgt_ref, *,
                    s, m, eps, n_rows, n_cols, row_block, col_block):
    """One (row_block, col_block) tile.

    Grid = (row blocks ['parallel'], class blocks ['arbitrary', innermost]).
    Running per-row exclusion sum / target logit live in VMEM scratch; the
    per-row-block partial loss sum is emitted on the last class block.  The
    final mean/scale is done in the wrapper so the row axis can be megacore-
    sharded on v7x.
    """
    i = pl.program_id(0)
    j = pl.program_id(1)

    @pl.when(j == 0)
    def _init():
        exsum_ref[...] = jnp.zeros_like(exsum_ref)
        tgt_ref[...] = jnp.zeros_like(tgt_ref)

    x = cls_ref[...].astype(jnp.float32)            # (TR, TC)
    lbl = label_ref[...]                            # (TR, 1) int32
    tr, tc = x.shape

    col = j * col_block + jax.lax.broadcasted_iota(jnp.int32, (tr, tc), 1)
    is_target = col == lbl                          # (TR, TC)
    col_valid = col < n_cols                        # masks ragged class tail

    # One exp pass; exclusion sum over valid, non-target columns (masked form
    # avoids the f32 cancellation of row_sum - exp(s*target)).
    e = jnp.exp(s * x)
    keep = jnp.logical_and(col_valid, jnp.logical_not(is_target))
    exsum_ref[...] += jnp.sum(jnp.where(keep, e, 0.0), axis=1, keepdims=True)
    # Target logit pick-up (labels are < n_cols, so is_target alone is valid).
    tgt_ref[...] += jnp.sum(jnp.where(is_target, x, 0.0), axis=1, keepdims=True)

    @pl.when(j == pl.num_programs(1) - 1)
    def _finalize():
        t = jnp.clip(tgt_ref[...], -1.0 + eps, 1.0 - eps)
        # s * cos(acos(t) + m) == s * (t*cos(m) - sqrt(1 - t^2)*sin(m))
        numerator = s * (t * math.cos(m) - jnp.sqrt(1.0 - t * t) * math.sin(m))
        denom = jnp.exp(numerator) + exsum_ref[...]
        L = numerator - jnp.log(denom)              # (TR, 1)
        row = jax.lax.broadcasted_iota(jnp.int32, (tr, 1), 0)
        row_valid = (i * row_block + row) < n_rows  # masks ragged row tail
        block_sum = jnp.sum(jnp.where(row_valid, L, 0.0))
        out_ref[...] = jnp.broadcast_to(block_sum, out_ref.shape).astype(jnp.float32)


def _pick_tiles(n, c, itemsize):
    """Generation-aware tile sizing: biggest tiles that fit comfortably in VMEM."""
    sub = max(8, 32 // itemsize)          # sublane multiple: f32 8, bf16 16, int8 32
    try:
        vmem_cap = int(pltpu.get_tpu_info().vmem_capacity_bytes)
    except Exception:
        vmem_cap = 64 * 1024 * 1024       # conservative fallback (v7x per-core VMEM)
    vmem_limit = (vmem_cap * 3) // 4      # headroom for Mosaic internals
    usable = vmem_limit - (2 << 20)       # output blocks / misc

    n_pad = _round_up(n, sub)

    # Bytes per block row: double-buffered cls tile + double-buffered i32 label
    # column + two f32 accumulator columns.
    per_row_full = 2 * c * itemsize + 2 * 4 + 2 * 4
    rb_full = usable // per_row_full

    if rb_full >= max(sub, 64):
        # Whole class axis per block; rows as large as the budget allows.
        cb = c
        rb = max(sub, min((rb_full // sub) * sub, n_pad))
    else:
        # Class count too large for full rows: tile C (innermost grid axis).
        rb = max(sub, min(n_pad, 256))
        cb = ((usable // rb - 16) // (2 * itemsize)) // 128 * 128
        cb = max(128, cb)
        if cb >= c:
            cb = c
    return rb, cb, vmem_limit


def arcface_loss(cls_score, label, *, s=32.0, m=0.5, eps=1e-7, loss_weight=1.0):
    n, c = cls_score.shape
    itemsize = jnp.dtype(cls_score.dtype).itemsize
    rb, cb, vmem_limit = _pick_tiles(n, c, itemsize)

    num_row_blocks = pl.cdiv(n, rb)
    num_col_blocks = pl.cdiv(c, cb)

    # No padding: ragged row / class tails are masked inside the kernel.
    lbl = label.astype(jnp.int32).reshape(n, 1)

    kernel = functools.partial(
        _arcface_kernel, s=float(s), m=float(m), eps=float(eps),
        n_rows=n, n_cols=c, row_block=rb, col_block=cb)

    out = pl.pallas_call(
        kernel,
        out_shape=jax.ShapeDtypeStruct((num_row_blocks, 8, 128), jnp.float32),
        grid_spec=pltpu.PrefetchScalarGridSpec(
            num_scalar_prefetch=0,
            grid=(num_row_blocks, num_col_blocks),
            in_specs=[
                pl.BlockSpec((rb, cb), lambda i, j: (i, j)),   # cls_score tile
                pl.BlockSpec((rb, 1), lambda i, j: (i, 0)),    # labels per row block
            ],
            out_specs=pl.BlockSpec((1, 8, 128), lambda i, j: (i, 0, 0)),
            scratch_shapes=[pltpu.VMEM((rb, 1), jnp.float32),   # running exclusion sum
                            pltpu.VMEM((rb, 1), jnp.float32)],  # running target logit
        ),
        compiler_params=pltpu.CompilerParams(
            dimension_semantics=("parallel", "arbitrary"),
            vmem_limit_bytes=int(vmem_limit)),
    )(cls_score, lbl)

    partials = out[:, 0, 0]                         # per-row-block sums of L
    return jnp.float32(loss_weight) * (-(jnp.sum(partials) / jnp.float32(n)))


def arcface_ref(cls_score, label, s=32.0, m=0.5, eps=1e-7, loss_weight=1.0):
    """Pure-numpy reference matching the PyTorch forward exactly."""
    x = np.asarray(cls_score, np.float64)
    lbl = np.asarray(label)
    n, c = x.shape
    target = x[np.arange(n), lbl]
    numerator = s * np.cos(np.arccos(np.clip(target, -1.0 + eps, 1.0 - eps)) + m)
    mask = np.ones((n, c), bool)
    mask[np.arange(n), lbl] = False
    excl = x[mask].reshape(n, c - 1)
    denom = np.exp(numerator) + np.sum(np.exp(s * excl), axis=1)
    L = numerator - np.log(denom)
    return loss_weight * (-np.mean(L))


if __name__ == "__main__":
    key = jax.random.PRNGKey(0)

    # Case 1: aligned shapes (16 samples, 32 classes).
    k1, k2, k3, k4 = jax.random.split(key, 4)
    N1, C1 = 16, 32
    cls1 = jax.random.uniform(k1, (N1, C1), dtype=jnp.float32, minval=-1.0, maxval=1.0)
    lab1 = jax.random.randint(k2, (N1,), 0, C1, dtype=jnp.int32)
    loss1 = jax.block_until_ready(arcface_loss(cls1, lab1, s=32.0, m=0.5,
                                               eps=1e-7, loss_weight=1.0))
    ref1 = arcface_ref(np.asarray(cls1), np.asarray(lab1))
    assert np.allclose(float(loss1), ref1, rtol=1e-4, atol=1e-4), (float(loss1), ref1)

    # Case 2: ragged shapes (13 samples, 40 classes) — exercises the no-pad path.
    N2, C2 = 13, 40
    cls2 = jax.random.uniform(k3, (N2, C2), dtype=jnp.float32, minval=-1.0, maxval=1.0)
    lab2 = jax.random.randint(k4, (N2,), 0, C2, dtype=jnp.int32)
    loss2 = jax.block_until_ready(arcface_loss(cls2, lab2, s=32.0, m=0.5,
                                               eps=1e-7, loss_weight=1.0))
    ref2 = arcface_ref(np.asarray(cls2), np.asarray(lab2))
    assert np.allclose(float(loss2), ref2, rtol=1e-4, atol=1e-4), (float(loss2), ref2)

    print("KERNEL_OK")
</pallas_src>

<mosaic_0001>
module attributes {stable_mosaic.version = 11 : i64} {
  func.func @_arcface_kernel(%arg0: i32, %arg1: i32, %arg2: memref<16x32xf32, #tpu.memory_space<vmem>>, %arg3: memref<16x1xi32, #tpu.memory_space<vmem>>, %arg4: memref<1x8x128xf32, #tpu.memory_space<vmem>>, %arg5: memref<16x1xf32, #tpu.memory_space<vmem>>, %arg6: memref<16x1xf32, #tpu.memory_space<vmem>>) attributes {dimension_semantics = [#tpu.dimension_semantics<parallel>, #tpu.dimension_semantics<arbitrary>], iteration_bounds = array<i64: 1, 1>, scalar_prefetch = 0 : i64, scratch_operands = 2 : i64, tpu.core_type = #tpu.core_type<tc>, window_params = [{transform_indices = @transform_0, window_bounds = array<i64: 16, 32>}, {transform_indices = @transform_1, window_bounds = array<i64: 16, 1>}, {transform_indices = @transform_2, window_bounds = array<i64: 1, 8, 128>}]} {
    %c0_i32 = arith.constant 0 : i32
    %0 = arith.cmpi eq, %arg1, %c0_i32 : i32
    %1 = arith.extui %0 : i1 to i32
    %c0_i32_0 = arith.constant 0 : i32
    %2 = arith.cmpi ne, %1, %c0_i32_0 : i32
    scf.if %2 {
      %cst_20 = arith.constant 0.000000e+00 : f32
      %35 = vector.broadcast %cst_20 : f32 to vector<16x1xf32>
      %c0_21 = arith.constant 0 : index
      %c0_22 = arith.constant 0 : index
      %36 = vector.load %arg5[%c0_21, %c0_22] : memref<16x1xf32, #tpu.memory_space<vmem>>, vector<16x1xf32>
      tpu.vector_store %arg5[%c0_21, %c0_22], %35 {strides = array<i32>} : memref<16x1xf32, #tpu.memory_space<vmem>>, vector<16x1xf32>,
      %cst_23 = arith.constant 0.000000e+00 : f32
      %37 = vector.broadcast %cst_23 : f32 to vector<16x1xf32>
      %c0_24 = arith.constant 0 : index
      %c0_25 = arith.constant 0 : index
      %38 = vector.load %arg6[%c0_24, %c0_25] : memref<16x1xf32, #tpu.memory_space<vmem>>, vector<16x1xf32>
      tpu.vector_store %arg6[%c0_24, %c0_25], %37 {strides = array<i32>} : memref<16x1xf32, #tpu.memory_space<vmem>>, vector<16x1xf32>,
    } else {
    }
    %c0 = arith.constant 0 : index
    %c0_1 = arith.constant 0 : index
    %3 = vector.load %arg2[%c0, %c0_1] : memref<16x32xf32, #tpu.memory_space<vmem>>, vector<16x32xf32>
    %c0_2 = arith.constant 0 : index
    %c0_3 = arith.constant 0 : index
    %4 = vector.load %arg3[%c0_2, %c0_3] : memref<16x1xi32, #tpu.memory_space<vmem>>, vector<16x1xi32>
    %c32_i32 = arith.constant 32 : i32
    %5 = arith.muli %arg1, %c32_i32 : i32
    %6 = tpu.iota {dimensions = array<i32: 1>} : vector<16x32xi32>
    %7 = vector.broadcast %5 : i32 to vector<16x32xi32>
    %8 = arith.addi %7, %6 : vector<16x32xi32>
    %9 = vector.broadcast %4 : vector<16x1xi32> to vector<16x32xi32>
    %10 = arith.cmpi eq, %8, %9 : vector<16x32xi32>
    %c32_i32_4 = arith.constant 32 : i32
    %11 = vector.broadcast %c32_i32_4 : i32 to vector<16x32xi32>
    %12 = arith.cmpi slt, %8, %11 : vector<16x32xi32>
    %cst = arith.constant 3.200000e+01 : f32
    %13 = vector.broadcast %cst : f32 to vector<16x32xf32>
    %14 = arith.mulf %13, %3 : vector<16x32xf32>
    %15 = math.exp %14 : vector<16x32xf32>
    %cst_5 = arith.constant dense<true> : vector<16x32xi1>
    %16 = arith.xori %10, %cst_5 : vector<16x32xi1>
    %17 = arith.andi %12, %16 : vector<16x32xi1>
    %c0_6 = arith.constant 0 : index
    %c0_7 = arith.constant 0 : index
    %18 = vector.load %arg5[%c0_6, %c0_7] : memref<16x1xf32, #tpu.memory_space<vmem>>, vector<16x1xf32>
    %cst_8 = arith.constant 0.000000e+00 : f32
    %19 = vector.broadcast %cst_8 : f32 to vector<16x32xf32>
    %20 = arith.select %17, %15, %19 : vector<16x32xi1>, vector<16x32xf32>
    %cst_9 = arith.constant dense<0.000000e+00> : vector<16xf32>
    %21 = vector.multi_reduction <add>, %20, %cst_9 [1] : vector<16x32xf32> to vector<16xf32>
    %22 = vector.shape_cast %21 : vector<16xf32> to vector<16x1xf32>
    %23 = arith.addf %18, %22 : vector<16x1xf32>
    %c0_10 = arith.constant 0 : index
    %c0_11 = arith.constant 0 : index
    %24 = vector.load %arg5[%c0_10, %c0_11] : memref<16x1xf32, #tpu.memory_space<vmem>>, vector<16x1xf32>
    tpu.vector_store %arg5[%c0_10, %c0_11], %23 {strides = array<i32>} : memref<16x1xf32, #tpu.memory_space<vmem>>, vector<16x1xf32>,
    %c0_12 = arith.constant 0 : index
    %c0_13 = arith.constant 0 : index
    %25 = vector.load %arg6[%c0_12, %c0_13] : memref<16x1xf32, #tpu.memory_space<vmem>>, vector<16x1xf32>
    %cst_14 = arith.constant 0.000000e+00 : f32
    %26 = vector.broadcast %cst_14 : f32 to vector<16x32xf32>
    %27 = arith.select %10, %3, %26 : vector<16x32xi1>, vector<16x32xf32>
    %cst_15 = arith.constant dense<0.000000e+00> : vector<16xf32>
    %28 = vector.multi_reduction <add>, %27, %cst_15 [1] : vector<16x32xf32> to vector<16xf32>
    %29 = vector.shape_cast %28 : vector<16xf32> to vector<16x1xf32>
    %30 = arith.addf %25, %29 : vector<16x1xf32>
    %c0_16 = arith.constant 0 : index
    %c0_17 = arith.constant 0 : index
    %31 = vector.load %arg6[%c0_16, %c0_17] : memref<16x1xf32, #tpu.memory_space<vmem>>, vector<16x1xf32>
    tpu.vector_store %arg6[%c0_16, %c0_17], %30 {strides = array<i32>} : memref<16x1xf32, #tpu.memory_space<vmem>>, vector<16x1xf32>,
    %c0_i32_18 = arith.constant 0 : i32
    %32 = arith.cmpi eq, %arg1, %c0_i32_18 : i32
    %33 = arith.extui %32 : i1 to i32
    %c0_i32_19 = arith.constant 0 : i32
    %34 = arith.cmpi ne, %33, %c0_i32_19 : i32
    scf.if %34 {
      %c0_20 = arith.constant 0 : index
      %c0_21 = arith.constant 0 : index
      %35 = vector.load %arg6[%c0_20, %c0_21] : memref<16x1xf32, #tpu.memory_space<vmem>>, vector<16x1xf32>
      %cst_22 = arith.constant -0.99999988 : f32
      %cst_23 = arith.constant 0.99999988 : f32
      %36 = vector.broadcast %cst_22 : f32 to vector<16x1xf32>
      %37 = arith.maximumf %36, %35 : vector<16x1xf32>
      %38 = vector.broadcast %cst_23 : f32 to vector<16x1xf32>
      %39 = arith.minimumf %38, %37 : vector<16x1xf32>
      %cst_24 = arith.constant 0.87758255 : f32
      %40 = vector.broadcast %cst_24 : f32 to vector<16x1xf32>
      %41 = arith.mulf %39, %40 : vector<16x1xf32>
      %42 = arith.mulf %39, %39 : vector<16x1xf32>
      %cst_25 = arith.constant 1.000000e+00 : f32
      %43 = vector.broadcast %cst_25 : f32 to vector<16x1xf32>
      %44 = arith.subf %43, %42 : vector<16x1xf32>
      %45 = math.sqrt %44 : vector<16x1xf32>
      %cst_26 = arith.constant 0.47942555 : f32
      %46 = vector.broadcast %cst_26 : f32 to vector<16x1xf32>
      %47 = arith.mulf %45, %46 : vector<16x1xf32>
      %48 = arith.subf %41, %47 : vector<16x1xf32>
      %cst_27 = arith.constant 3.200000e+01 : f32
      %49 = vector.broadcast %cst_27 : f32 to vector<16x1xf32>
      %50 = arith.mulf %49, %48 : vector<16x1xf32>
      %51 = math.exp %50 : vector<16x1xf32>
      %c0_28 = arith.constant 0 : index
      %c0_29 = arith.constant 0 : index
      %52 = vector.load %arg5[%c0_28, %c0_29] : memref<16x1xf32, #tpu.memory_space<vmem>>, vector<16x1xf32>
      %53 = arith.addf %51, %52 : vector<16x1xf32>
      %54 = math.log %53 : vector<16x1xf32>
      %55 = arith.subf %50, %54 : vector<16x1xf32>
      %56 = tpu.iota {dimensions = array<i32: 0>} : vector<16x1xi32>
      %c16_i32 = arith.constant 16 : i32
      %57 = arith.muli %arg0, %c16_i32 : i32
      %58 = vector.broadcast %57 : i32 to vector<16x1xi32>
      %59 = arith.addi %58, %56 : vector<16x1xi32>
      %c16_i32_30 = arith.constant 16 : i32
      %60 = vector.broadcast %c16_i32_30 : i32 to vector<16x1xi32>
      %61 = arith.cmpi slt, %59, %60 : vector<16x1xi32>
      %cst_31 = arith.constant 0.000000e+00 : f32
      %62 = vector.broadcast %cst_31 : f32 to vector<16x1xf32>
      %63 = arith.select %61, %55, %62 : vector<16x1xi1>, vector<16x1xf32>
      %64 = vector.shape_cast %63 : vector<16x1xf32> to vector<1x16x1xf32>
      %cst_32 = arith.constant dense<0.000000e+00> : vector<1xf32>
      %65 = vector.multi_reduction <add>, %64, %cst_32 [1, 2] : vector<1x16x1xf32> to vector<1xf32>
      %66 = vector.shape_cast %65 : vector<1xf32> to vector<1x1x1xf32>
      %67 = vector.extract %66[0, 0, 0] : f32 from vector<1x1x1xf32>
      %68 = vector.broadcast %67 : f32 to vector<1x8x128xf32>
      %c0_33 = arith.constant 0 : index
      %c0_34 = arith.constant 0 : index
      %c0_35 = arith.constant 0 : index
      %69 = vector.load %arg4[%c0_33, %c0_34, %c0_35] : memref<1x8x128xf32, #tpu.memory_space<vmem>>, vector<1x8x128xf32>
      tpu.vector_store %arg4[%c0_33, %c0_34, %c0_35], %68 {strides = array<i32>} : memref<1x8x128xf32, #tpu.memory_space<vmem>>, vector<1x8x128xf32>,
    } else {
    }
    return
  }
  func.func @transform_0(%arg0: i32, %arg1: i32) -> (i32, i32) {
    %c0_i32 = arith.constant 0 : i32
    return %arg0, %arg1 : i32, i32
  }
  func.func @transform_1(%arg0: i32, %arg1: i32) -> (i32, i32) {
    %c0_i32 = arith.constant 0 : i32
    %c0_i32_0 = arith.constant 0 : i32
    return %arg0, %c0_i32 : i32, i32
  }
  func.func @transform_2(%arg0: i32, %arg1: i32) -> (i32, i32, i32) {
    %c0_i32 = arith.constant 0 : i32
    %c0_i32_0 = arith.constant 0 : i32
    %c0_i32_1 = arith.constant 0 : i32
    return %arg0, %c0_i32, %c0_i32_0 : i32, i32, i32
  }
}

</mosaic_0001>

<llo_original>
// kernel: tpu_custom_call.1
$region0: #{tpu_custom_call.1}
  #allocation0 [shape = 'u32[]', space=smem, size = 0x4, offset = 0x4, fixed_abs, tag = 'smem constant byte address 0x4 - core index']
  #allocation1 [shape = 'u32[144,128]{1,0:T(1,128)}', space=vmem, size = 0x12000, scoped, tag = 'internal scratch']
  #allocation2 [shape = 'f32[16,1]{1,0:T(8,128)}', space=vmem, size = 0x2000, scoped, tag = 'scratch operand']
  #allocation3 [shape = 'f32[16,1]{1,0:T(8,128)}', space=vmem, size = 0x2000, scoped, tag = 'scratch operand']
  %s0 = inlined_call_operand.vmem [shape: f32[16,32], index: 0, kind: input, shape index: {}]
  %s1 = inlined_call_operand.vmem [shape: s32[16,1], index: 1, kind: input, shape index: {}]
  %s2 = inlined_call_operand.hbm [shape: f32[1,8,128], index: 2, kind: output, shape index: {}]
  %s3 = sld [smem:[#allocation0]]
  $region26: #{tpu_custom_call.1} parent=0
    _
  %s5 = ssub.s32 1, %s3
  %s6 = scalar_select 0, %s5, %s3
  $region1: #{tpu_custom_call.1} parent=0
    #allocation4 [shape = 'u8[4096]{0}', space=vmem, size = 0x1000, scoped, tag = 'output window, operand 0, single buffered']
    #allocation5 [shape = 's32[1]{0}', space=sflag, size = 0x4, scoped, tag = 'scoped memory for tpu_custom_call.1']
    %7 = vsyncpa [#allocation5], 0
    // Predicated region
    $region2: #{tpu_custom_call.1} parent=1 // pred_check
      _
    $region3: #{tpu_custom_call.1} parent=1 // pred_check_branch
      %9 = sbr.rel (0) target = $region5
    $region4: #{tpu_custom_call.1} parent=1 // pred_region
      _
    $region5: #{tpu_custom_call.1} parent=1 // pred_fallthru
      _
    // Predicated region
    $region6: #{tpu_custom_call.1} parent=1 // pred_check
      _
    $region7: #{tpu_custom_call.1} parent=1 // pred_check_branch
      %11 = sbr.rel (0) target = $region9
    $region8: #{tpu_custom_call.1} parent=1 // pred_region
      _
    $region9: #{tpu_custom_call.1} parent=1 // pred_fallthru
      _
    %p12 = scmp.eq.s32.totalorder 0, 0
    // Predicated region
    $region10: #{tpu_custom_call.1} parent=1 // pred_check
      %p13 = pneg %p12
    $region11: #{tpu_custom_call.1} parent=1 // pred_check_branch
      %15 = sbr.rel (%p13) target = $region13
    $region12: #{tpu_custom_call.1} parent=1 // pred_region
      %vm16 = vcmask 7168
      %17 = vst.msk [vmem:[#allocation2] sm:$0xff] %vm16, 0.0
      %18 = vst.msk [vmem:[#allocation2 + $0x8] sm:$0xff] %vm16, 0.0
      %19 = vst.msk [vmem:[#allocation3] sm:$0xff] %vm16, 0.0
      %20 = vst.msk [vmem:[#allocation3 + $0x8] sm:$0xff] %vm16, 0.0
    $region13: #{tpu_custom_call.1} parent=1 // pred_fallthru
      _
    %v21 = vld [vmem:[%s0] sm:$0xff]
    %v22 = vld [vmem:[%s0 + $0x8] sm:$0xff]
    %v23 = vld [vmem:[%s1] sm:$0xff]
    %v24 = vld [vmem:[%s1 + $0x8] sm:$0xff]
    %s25 = smul.u32 0, 32
    %v26 = vlaneseq
    %v27 = vand.u32 %v26, 127
    %v28 = vstv %s25
    %v29 = vadd.s32 %v28, %v27
    %30 = vset.pattern.permute.xlu0 0
    %31 = vperm.xlu0 %30, %v23
    %v32 = vpop.permute.xlu0 %31
    %33 = vset.pattern.permute.xlu0 0
    %34 = vperm.xlu0 %33, %v24
    %v35 = vpop.permute.xlu0 %34
    %vm36 = vcmp.eq.s32.totalorder %v29, %v32
    %vm37 = vcmp.eq.s32.totalorder %v29, %v35
    %vm38 = vcmp.lt.s32.totalorder %v29, 32
    %v39 = vmul.f32 %v21, 32.0
    %v40 = vmul.f32 %v22, 32.0
    %v41 = vmul.f32 %v39, 1.442695
    %v42 = vpow.pop %v41
    %v43 = vmul.f32 %v40, 1.442695
    %v44 = vpow.pop %v43
    %vm45 = vmxor %vm36, 1
    %vm46 = vmxor %vm37, 1
    %vm47 = vmand %vm38, %vm45
    %vm48 = vmand %vm38, %vm46
    %v49 = vld [vmem:[#allocation2] sm:$0xff]
    %v50 = vld [vmem:[#allocation2 + $0x8] sm:$0xff]
    %v51 = vsel %vm47, %v42, 0.0
    %v52 = vsel %vm48, %v44, 0.0
    %vm53 = vcmask 261120
    %v54 = vsel %vm53, %v51, 0.0
    %55 = vadd.xlane.f32.xlu0 %v54
    %v56 = vpop.xlane.xlu0 %55
    %v57 = vsel %vm53, %v52, 0.0
    %58 = vadd.xlane.f32.xlu0 %v57
    %v59 = vpop.xlane.xlu0 %58
    %v60 = vadd.f32 %v49, %v56
    %v61 = vadd.f32 %v50, %v59
    %vm62 = vcmask 7168
    %63 = vst.msk [vmem:[#allocation2] sm:$0xff] %vm62, %v60
    %64 = vst.msk [vmem:[#allocation2 + $0x8] sm:$0xff] %vm62, %v61
    %v65 = vld [vmem:[#allocation3] sm:$0xff]
    %v66 = vld [vmem:[#allocation3 + $0x8] sm:$0xff]
    %v67 = vsel %vm36, %v21, 0.0
    %v68 = vsel %vm37, %v22, 0.0
    %v69 = vsel %vm53, %v67, 0.0
    %70 = vadd.xlane.f32.xlu0 %v69
    %v71 = vpop.xlane.xlu0 %70
    %v72 = vsel %vm53, %v68, 0.0
    %73 = vadd.xlane.f32.xlu0 %v72
    %v74 = vpop.xlane.xlu0 %73
    %v75 = vadd.f32 %v65, %v71
    %v76 = vadd.f32 %v66, %v74
    %77 = vst.msk [vmem:[#allocation3] sm:$0xff] %vm62, %v75
    %78 = vst.msk [vmem:[#allocation3 + $0x8] sm:$0xff] %vm62, %v76
    // Predicated region
    $region14: #{tpu_custom_call.1} parent=1 // pred_check
      %p79 = pneg %p12
    $region15: #{tpu_custom_call.1} parent=1 // pred_check_branch
      %81 = sbr.rel (%p79) target = $region17
    $region16: #{tpu_custom_call.1} parent=1 // pred_region
      %v82 = vld [vmem:[#allocation3] sm:$0xff]
      %v83 = vld [vmem:[#allocation3 + $0x8] sm:$0xff]
      %v84 = vmax.f32 %v82, -0.9999999
      %v85 = vmax.f32 %v83, -0.9999999
      %v86 = vmin.f32 %v84, 0.9999999
      %v87 = vmin.f32 %v85, 0.9999999
      %v88 = vmul.f32 %v86, 0.87758255
      %v89 = vmul.f32 %v87, 0.87758255
      %v90 = vmul.f32 %v86, %v86
      %v91 = vmul.f32 %v87, %v87
      %v92 = vsub.f32 1.0, %v90
      %v93 = vsub.f32 1.0, %v91
      %v94 = vrsqrt.pop %v92
      %v95 = vmul.f32 %v92, %v94
      %vm96 = vcmp.eq.f32.partialorder %v92, inf
      %v97 = vsel %vm96, %v92, %v95
      %vm98 = vcmp.eq.f32.partialorder %v92, 0.0
      %v99 = vand.u32 %v92, 2147483648
      %v100 = vsel %vm98, %v99, %v97
      %v101 = vrsqrt.pop %v93
      %v102 = vmul.f32 %v93, %v101
      %vm103 = vcmp.eq.f32.partialorder %v93, inf
      %v104 = vsel %vm103, %v93, %v102
      %vm105 = vcmp.eq.f32.partialorder %v93, 0.0
      %v106 = vand.u32 %v93, 2147483648
      %v107 = vsel %vm105, %v106, %v104
      %v108 = vmul.f32 %v100, 0.47942555
      %v109 = vmul.f32 %v107, 0.47942555
      %v110 = vsub.f32 %v88, %v108
      %v111 = vsub.f32 %v89, %v109
      %v112 = vmul.f32 %v110, 32.0
      %v113 = vmul.f32 %v111, 32.0
      %v114 = vmul.f32 %v112, 1.442695
      %v115 = vpow.pop %v114
      %v116 = vmul.f32 %v113, 1.442695
      %v117 = vpow.pop %v116
      %v118 = vld [vmem:[#allocation2] sm:$0xff]
      %v119 = vld [vmem:[#allocation2 + $0x8] sm:$0xff]
      %v120 = vadd.f32 %v115, %v118
      %v121 = vadd.f32 %v117, %v119
      %v122 = vlog2.pop %v120
      %v123 = vmul.f32 %v122, 0.6931472
      %v124 = vlog2.pop %v121
      %v125 = vmul.f32 %v124, 0.6931472
      %v126 = vsub.f32 %v112, %v123
      %v127 = vsub.f32 %v113, %v125
      %v128 = vlaneseq
      %v129 = vshrl.u32 %v128, 7
      %v130 = vadd.s32 %v129, 8
      %s131 = smul.u32 0, 16
      %v132 = vstv %s131
      %v133 = vadd.s32 %v132, %v129
      %v134 = vadd.s32 %v132, %v130
      %vm135 = vcmp.lt.s32.totalorder %v133, 16
      %vm136 = vcmp.lt.s32.totalorder %v134, 16
      %v137 = vsel %vm135, %v126, 0.0
      %v138 = vsel %vm136, %v127, 0.0
      %v139 = vsel %vm62, %v137, 0.0
      %v140 = vsel %vm62, %v138, 0.0
      %v141 = vadd.f32 %v139, %v140
      %142 = vadd.xlane.f32.xlu0 %v141
      %v143 = vpop.xlane.xlu0 %142
      %v144 = vrot.slane %v143, 4
      %v145 = vadd.f32 %v143, %v144
      %v146 = vrot.slane %v145, 2
      %v147 = vadd.f32 %v145, %v146
      %v148 = vrot.slane %v147, 1
      %v149 = vadd.f32 %v147, %v148
      %s150 = vtos %v149
      %v151 = vstv %s150
      %152 = vst [vmem:[#allocation4] sm:$0xff] %v151
    $region17: #{tpu_custom_call.1} parent=1 // pred_fallthru
      _
    // Predicated region
    $region18: #{tpu_custom_call.1} parent=1 // pred_check
      _
    $region19: #{tpu_custom_call.1} parent=1 // pred_check_branch
      %154 = sbr.rel (0) target = $region21
    $region20: #{tpu_custom_call.1} parent=1 // pred_region
      %s156 = ssub.s32 128, 128
      %157 = vsyncadd [#allocation5], %s156
      %s159 = sshll.u32 [#allocation4], 4
      %s160 = int_to_ptr.vmem [resolvable:$true] %s159
      %162 = dma.vmem_to_hbm [thread:$0]  %s160, 128, %s2, [#allocation5]
    $region21: #{tpu_custom_call.1} parent=1 // pred_fallthru
      _
    // Predicated region
    $region22: #{tpu_custom_call.1} parent=1 // pred_check
      _
    $region23: #{tpu_custom_call.1} parent=1 // pred_check_branch
      %164 = sbr.rel (0) target = $region25
    $region24: #{tpu_custom_call.1} parent=1 // pred_region
      %165 = dma.done [#allocation5], 128
    $region25: #{tpu_custom_call.1} parent=1 // pred_fallthru
      _
    %166 = vsyncpa [#allocation5], 1

</llo_original>
